<compile_context>
chip_gen: v5e
topology: v5e:2x2
jax: 0.10.0
libtpu: 0.0.40
codegen_flags: <defaults>
</compile_context>

<pallas_src>
import functools

import jax
import jax.numpy as jnp
from jax.experimental import pallas as pl
from jax.experimental.pallas import tpu as pltpu

LN_EPS = 1e-12            # HF ViT layer_norm_eps
NEG_INF = -1e30
BF16 = jnp.bfloat16


def _round_up(x, m):
    return (x + m - 1) // m * m


def _vmem_limit_bytes():
    # v5e/v6e: 128 MiB physical VMEM -> ~96 MiB; v7x: 64 MiB physical -> ~48 MiB.
    try:
        cap = pltpu.get_tpu_info().vmem_capacity_bytes
        return int(min(96 * 1024 * 1024, cap * 3 // 4))
    except Exception:
        return 48 * 1024 * 1024


# --------------------------------------------------------------------------- #
# helpers shared by kernels and the pure-JAX reference
# --------------------------------------------------------------------------- #
def _layernorm(x, g, b):
    mu = jnp.mean(x, axis=-1, keepdims=True)
    var = jnp.mean((x - mu) ** 2, axis=-1, keepdims=True)
    return (x - mu) * jax.lax.rsqrt(var + LN_EPS) * g + b


# --------------------------------------------------------------------------- #
# Pallas kernels
# --------------------------------------------------------------------------- #
def _patch_embed_kernel(x_ref, w_ref, b_ref, o_ref):
    # x: (TM, C*p*p) bf16 @ w: (C*p*p, D) bf16, f32 accumulate, + bias
    o_ref[...] = (
        jnp.dot(x_ref[...], w_ref[...], preferred_element_type=jnp.float32)
        + b_ref[...]
    )


def _encoder_stack_kernel(num_heads,
                          x_ref, mask_ref,
                          ln1g_ref, ln1b_ref,
                          wq_ref, bq_ref, wk_ref, bk_ref, wv_ref, bv_ref,
                          wo_ref, bo_ref, ln2g_ref, ln2b_ref,
                          w1_ref, b1_ref, w2_ref, b2_ref,
                          o_ref, h2_ref):
    """One grid step == (TB batch elements, one encoder layer, one MLP M-tile).

    The residual stream lives in o_ref (same output block revisited across the
    layer and M-tile axes -> stays resident in VMEM for the whole stack).
    """
    l = pl.program_id(1)
    m = pl.program_id(2)

    TB, S_pad, D = o_ref.shape
    H = num_heads
    Dh = D // H
    scale = 1.0 / (Dh ** 0.5)

    @pl.when((l == 0) & (m == 0))
    def _init():
        o_ref[...] = x_ref[...]      # load the embedded sequence once per batch tile

    @pl.when(m == 0)
    def _attention_and_ln2():
        x = o_ref[...]                                   # (TB, S_pad, D) f32

        # ---- multi-head self-attention (pre-LN), head-major projections ----
        h = _layernorm(x, ln1g_ref[...], ln1b_ref[...]).astype(BF16)
        wq = wq_ref[0].reshape(D, H, Dh)
        wk = wk_ref[0].reshape(D, H, Dh)
        wv = wv_ref[0].reshape(D, H, Dh)
        # fold 1/sqrt(Dh) into q in f32, before the bf16 cast
        q = (jnp.einsum("bsd,dhe->bhse", h, wq,
                        preferred_element_type=jnp.float32)
             + bq_ref[...].reshape(1, H, 1, Dh)) * scale
        k = (jnp.einsum("bsd,dhe->bhse", h, wk,
                        preferred_element_type=jnp.float32)
             + bk_ref[...].reshape(1, H, 1, Dh))
        v = (jnp.einsum("bsd,dhe->bhse", h, wv,
                        preferred_element_type=jnp.float32)
             + bv_ref[...].reshape(1, H, 1, Dh))
        # TODO(synk): pack 2 heads per 128-lane tile when Dh < 128 for better MXU fill.

        scores = jnp.einsum("bhqe,bhke->bhqk", q.astype(BF16), k.astype(BF16),
                            preferred_element_type=jnp.float32)
        # additive key-padding mask, precomputed once in the wrapper
        scores = scores + mask_ref[...].reshape(1, 1, 1, S_pad)
        scores = scores - jnp.max(scores, axis=-1, keepdims=True)
        p = jnp.exp(scores)
        attn = p / jnp.sum(p, axis=-1, keepdims=True)    # exact divide (EUP-cheap)
        ctx = jnp.einsum("bhqk,bhke->bhqe", attn.astype(BF16), v.astype(BF16),
                         preferred_element_type=jnp.float32)
        ctx = jnp.transpose(ctx, (0, 2, 1, 3)).reshape(TB, S_pad, D)
        attn_out = jnp.einsum("bsd,de->bse", ctx.astype(BF16), wo_ref[0],
                              preferred_element_type=jnp.float32) + bo_ref[...]
        x = x + attn_out

        # residual (MLP output bias b2 added once here) + cached pre-MLP LayerNorm
        o_ref[...] = x + b2_ref[...]
        h2_ref[...] = _layernorm(x, ln2g_ref[...], ln2b_ref[...]).astype(BF16)

    # ---- MLP M-tile (every m): accumulate gelu(h2 @ w1_tile) @ w2_tile ----
    h2 = h2_ref[...]
    part = (jnp.einsum("bsd,dm->bsm", h2, w1_ref[0],
                       preferred_element_type=jnp.float32) + b1_ref[...])
    part = jax.nn.gelu(part, approximate=True)
    o_ref[...] += jnp.einsum("bsm,md->bsd", part.astype(BF16), w2_ref[0],
                             preferred_element_type=jnp.float32)


def _head_kernel(x_ref, lng_ref, lnb_ref, w_ref, b_ref, o_ref):
    # final LayerNorm on CLS tokens + Linear classifier (num_classes padded to 128)
    h = _layernorm(x_ref[...], lng_ref[...], lnb_ref[...]).astype(BF16)
    o_ref[...] = (
        jnp.dot(h, w_ref[...], preferred_element_type=jnp.float32) + b_ref[...]
    )


# --------------------------------------------------------------------------- #
# pallas_call wrappers
# --------------------------------------------------------------------------- #
def _patch_embed(patches, params, cfg):
    rows, K = patches.shape
    D = cfg["hidden"]
    TM = min(512, _round_up(rows, 8))
    rows_pad = _round_up(rows, TM)
    x = jnp.pad(patches, ((0, rows_pad - rows), (0, 0)))
    out = pl.pallas_call(
        _patch_embed_kernel,
        grid=(rows_pad // TM,),
        in_specs=[
            pl.BlockSpec((TM, K), lambda i: (i, 0)),
            pl.BlockSpec((K, D), lambda i: (0, 0)),
            pl.BlockSpec((1, D), lambda i: (0, 0)),
        ],
        out_specs=pl.BlockSpec((TM, D), lambda i: (i, 0)),
        out_shape=jax.ShapeDtypeStruct((rows_pad, D), jnp.float32),
        compiler_params=pltpu.CompilerParams(dimension_semantics=("parallel",)),
    )(x, params["patch_w"], params["patch_b"])
    return out[:rows]


_FIXED_LAYER_PARAMS = ("ln1_g", "ln1_b", "w_q", "b_q", "w_k", "b_k", "w_v", "b_v",
                       "w_o", "b_o", "ln2_g", "ln2_b")


def _encoder_stack(seq, key_mask, params, cfg, tb, mlp_tile):
    B, S_pad, D = seq.shape
    L = int(params["w_q"].shape[0])
    M = int(params["w_1"].shape[-1])
    assert B % tb == 0

    tm = mlp_tile
    if tm <= 0 or tm > M or (M % tm) != 0 or (tm % 128) != 0:
        tm = M                      # fall back to an un-tiled MLP hidden dim
    n_m = M // tm

    def per_layer_spec(arr):
        nd = arr.ndim
        return pl.BlockSpec((1,) + arr.shape[1:],
                            lambda b, l, m, _n=nd: (l,) + (0,) * (_n - 1))

    # TODO(synk): on v6e, deepen weight prefetch with pipeline_mode=pl.Buffered(3) on
    # the large weight specs (not on v7x); and reclaim seq's buffer (only read at l==0).
    seq_spec = pl.BlockSpec((tb, S_pad, D), lambda b, l, m: (b, 0, 0))
    mask_spec = pl.BlockSpec((1, S_pad), lambda b, l, m: (0, 0))
    w1_spec = pl.BlockSpec((1, D, tm), lambda b, l, m: (l, 0, m))
    b1_spec = pl.BlockSpec((1, 1, tm), lambda b, l, m: (l, 0, m))
    w2_spec = pl.BlockSpec((1, tm, D), lambda b, l, m: (l, m, 0))
    b2_spec = pl.BlockSpec((1, 1, D), lambda b, l, m: (l, 0, 0))

    fixed = [params[name] for name in _FIXED_LAYER_PARAMS]

    # TODO(synk): on v7x verify the batch axis splits across both TensorCores
    # (pltpu.CORE_PARALLEL / pl.core_map) -- paired with tb>1 per core.
    return pl.pallas_call(
        functools.partial(_encoder_stack_kernel, cfg["heads"]),
        grid=(B // tb, L, n_m),          # batch parallel, layers & MLP tiles streamed
        in_specs=[seq_spec, mask_spec]
                 + [per_layer_spec(a) for a in fixed]
                 + [w1_spec, b1_spec, w2_spec, b2_spec],
        out_specs=pl.BlockSpec((tb, S_pad, D), lambda b, l, m: (b, 0, 0)),
        out_shape=jax.ShapeDtypeStruct((B, S_pad, D), jnp.float32),
        scratch_shapes=[pltpu.VMEM((tb, S_pad, D), BF16)],   # cached LN2 activation
        compiler_params=pltpu.CompilerParams(
            dimension_semantics=("parallel", "arbitrary", "arbitrary"),
            vmem_limit_bytes=_vmem_limit_bytes(),
        ),
    )(seq, key_mask, *fixed,
      params["w_1"], params["b_1"], params["w_2"], params["b_2"])


def _classifier_head(cls_tok, params, cfg):
    B, D = cls_tok.shape
    NC = cfg["num_classes"]
    NC_pad = _round_up(NC, 128)          # lane-dense output, unmasked stores
    TB = min(_round_up(B, 8), 128)       # one big tile (whole head in 1 step if B<=128)
    B_pad = _round_up(B, TB)
    x = jnp.pad(cls_tok, ((0, B_pad - B), (0, 0)))
    w = jnp.pad(params["cls_w"], ((0, 0), (0, NC_pad - NC)))
    b = jnp.pad(params["cls_b"], ((0, 0), (0, NC_pad - NC)))
    out = pl.pallas_call(
        _head_kernel,
        grid=(B_pad // TB,),
        in_specs=[
            pl.BlockSpec((TB, D), lambda i: (i, 0)),
            pl.BlockSpec((1, D), lambda i: (0, 0)),
            pl.BlockSpec((1, D), lambda i: (0, 0)),
            pl.BlockSpec((D, NC_pad), lambda i: (0, 0)),
            pl.BlockSpec((1, NC_pad), lambda i: (0, 0)),
        ],
        out_specs=pl.BlockSpec((TB, NC_pad), lambda i: (i, 0)),
        out_shape=jax.ShapeDtypeStruct((B_pad, NC_pad), jnp.float32),
        compiler_params=pltpu.CompilerParams(dimension_semantics=("parallel",)),
    )(x, params["ln_f_g"], params["ln_f_b"], w, b)
    return out[:B, :NC]


# --------------------------------------------------------------------------- #
# parameter init (deterministic, synthetic; weights stored bf16 for the MXU)
# --------------------------------------------------------------------------- #
def init_params(key, cfg):
    D, M, p, C, L = (cfg["hidden"], cfg["mlp"], cfg["patch"], cfg["channels"],
                     cfg["layers"])
    n_patches = (cfg["image"] // p) ** 2
    S = n_patches + 1
    NC = cfg["num_classes"]
    K = C * p * p
    keys = iter(jax.random.split(key, 8 + 12 * L))

    def nrm(shape, dtype=jnp.float32):
        return (0.02 * jax.random.normal(next(keys), shape, jnp.float32)).astype(dtype)

    def layer_stack(shape, dtype=jnp.float32):
        return jnp.stack([nrm(shape, dtype) for _ in range(L)], axis=0)

    params = {
        "patch_w": nrm((K, D), BF16),
        "patch_b": nrm((1, D)),
        "cls_token": nrm((1, 1, D)),
        "pos_emb": nrm((1, S, D)),
        "ln_f_g": jnp.ones((1, D), jnp.float32),
        "ln_f_b": jnp.zeros((1, D), jnp.float32),
        "cls_w": nrm((D, NC), BF16),
        "cls_b": jnp.zeros((1, NC), jnp.float32),
        # per-layer weights stacked along a leading L axis (streamed over the grid)
        "ln1_g": jnp.ones((L, 1, D), jnp.float32),
        "ln1_b": jnp.zeros((L, 1, D), jnp.float32),
        "w_q": layer_stack((D, D), BF16),
        "b_q": layer_stack((1, D)),
        "w_k": layer_stack((D, D), BF16),
        "b_k": layer_stack((1, D)),
        "w_v": layer_stack((D, D), BF16),
        "b_v": layer_stack((1, D)),
        "w_o": layer_stack((D, D), BF16),
        "b_o": layer_stack((1, D)),
        "ln2_g": jnp.ones((L, 1, D), jnp.float32),
        "ln2_b": jnp.zeros((L, 1, D), jnp.float32),
        "w_1": layer_stack((D, M), BF16),
        "b_1": layer_stack((1, M)),
        "w_2": layer_stack((M, D), BF16),
        "b_2": layer_stack((1, D)),
    }
    return params


# --------------------------------------------------------------------------- #
# forward pass
# --------------------------------------------------------------------------- #
def _extract_patches(x_nchw, cfg):
    """Glue: Normalize + patch extraction matching Conv2d(k=patch, stride=patch)."""
    B, C, H, W = x_nchw.shape
    p = cfg["patch"]
    mean = jnp.asarray(cfg["image_mean"], jnp.float32).reshape(1, C, 1, 1)
    std = jnp.asarray(cfg["image_std"], jnp.float32).reshape(1, C, 1, 1)
    # TODO(synk): random augmentations in transforms_ViT (rotation / resized crop /
    # color jitter / grayscale / invert) have no deterministic eval semantics; skipped.
    x = (x_nchw - mean) / std
    nh, nw = H // p, W // p
    patches = (x.reshape(B, C, nh, p, nw, p)
                 .transpose(0, 2, 4, 1, 3, 5)
                 .reshape(B * nh * nw, C * p * p)).astype(BF16)   # bf16 HBM read
    return patches, nh * nw


def custom_vit_forward(x_nchw, params, cfg, *, tb=4, mlp_tile=1024):
    B = x_nchw.shape[0]
    D = cfg["hidden"]
    patches, n_patches = _extract_patches(x_nchw, cfg)

    # patch embedding matmul (Pallas, 512-row tiles, bf16 input)
    emb = _patch_embed(patches, params, cfg).reshape(B, n_patches, D)

    # glue: prepend CLS token, add position embeddings (Dropout(0.1) = identity in eval)
    cls = jnp.broadcast_to(params["cls_token"], (B, 1, D))
    seq = jnp.concatenate([cls, emb], axis=1) + params["pos_emb"]
    S = n_patches + 1

    # pad sequence to a sublane multiple only (197 -> 200, not 256); padded keys are
    # masked via a precomputed additive mask, padded query rows stay finite and unused.
    S_pad = _round_up(S, 8)
    seq = jnp.pad(seq, ((0, 0), (0, S_pad - S), (0, 0)))
    key_mask = jnp.where(jnp.arange(S_pad) < S, 0.0, NEG_INF)
    key_mask = key_mask.astype(jnp.float32).reshape(1, S_pad)

    # process tb images per encoder grid step (amortizes per-layer weight DMA)
    tb = max(1, min(tb, B))
    B_pad = _round_up(B, tb)
    if B_pad != B:
        seq = jnp.pad(seq, ((0, B_pad - B), (0, 0), (0, 0)))

    # whole transformer encoder stack in ONE fused, pipelined Pallas call
    seq_out = _encoder_stack(seq, key_mask, params, cfg, tb, mlp_tile)

    # final LayerNorm on CLS token + classifier head (Pallas, lane-padded classes)
    cls_tok = seq_out[:B, 0, :]
    return _classifier_head(cls_tok, params, cfg)


# --------------------------------------------------------------------------- #
# pure-JAX reference (mirrors the kernel's bf16-in / f32-accumulate numerics)
# --------------------------------------------------------------------------- #
def reference_forward(x_nchw, params, cfg):
    B = x_nchw.shape[0]
    D, H = cfg["hidden"], cfg["heads"]
    Dh = D // H
    scale = 1.0 / (Dh ** 0.5)
    patches, n_patches = _extract_patches(x_nchw, cfg)
    emb = (jnp.dot(patches, params["patch_w"],
                   preferred_element_type=jnp.float32) + params["patch_b"])
    emb = emb.reshape(B, n_patches, D)
    cls = jnp.broadcast_to(params["cls_token"], (B, 1, D))
    x = jnp.concatenate([cls, emb], axis=1) + params["pos_emb"]
    S = x.shape[1]
    L = int(params["w_q"].shape[0])
    for l in range(L):
        h = _layernorm(x, params["ln1_g"][l], params["ln1_b"][l]).astype(BF16)
        # scale folded into q in f32 before the bf16 cast (matches the kernel)
        q = (jnp.einsum("bsd,de->bse", h, params["w_q"][l],
                        preferred_element_type=jnp.float32) + params["b_q"][l]) * scale
        k = jnp.einsum("bsd,de->bse", h, params["w_k"][l],
                       preferred_element_type=jnp.float32) + params["b_k"][l]
        v = jnp.einsum("bsd,de->bse", h, params["w_v"][l],
                       preferred_element_type=jnp.float32) + params["b_v"][l]
        q = q.reshape(B, S, H, Dh).astype(BF16)
        k = k.reshape(B, S, H, Dh).astype(BF16)
        v = v.reshape(B, S, H, Dh).astype(BF16)
        sc = jnp.einsum("bqhd,bkhd->bhqk", q, k,
                        preferred_element_type=jnp.float32)
        sc = sc - jnp.max(sc, axis=-1, keepdims=True)
        p = jnp.exp(sc)
        attn = p / jnp.sum(p, axis=-1, keepdims=True)
        ctx = jnp.einsum("bhqk,bkhd->bqhd", attn.astype(BF16), v,
                         preferred_element_type=jnp.float32).reshape(B, S, D)
        x = x + jnp.einsum("bsd,de->bse", ctx.astype(BF16), params["w_o"][l],
                           preferred_element_type=jnp.float32) + params["b_o"][l]
        h2 = _layernorm(x, params["ln2_g"][l], params["ln2_b"][l]).astype(BF16)
        m = jnp.einsum("bsd,dm->bsm", h2, params["w_1"][l],
                       preferred_element_type=jnp.float32) + params["b_1"][l]
        m = jax.nn.gelu(m, approximate=True)
        x = x + jnp.einsum("bsm,md->bsd", m.astype(BF16), params["w_2"][l],
                           preferred_element_type=jnp.float32) + params["b_2"][l]
    cls_tok = _layernorm(x[:, 0, :], params["ln_f_g"], params["ln_f_b"]).astype(BF16)
    return (jnp.dot(cls_tok, params["cls_w"], preferred_element_type=jnp.float32)
            + params["cls_b"])


# --------------------------------------------------------------------------- #
if __name__ == "__main__":
    cfg = dict(
        image=32, channels=3, patch=16,          # 2x2 = 4 patches, S = 5 -> S_pad = 8
        hidden=128, heads=4, mlp=256, layers=2,  # lane-dense scaled-down ViT encoder
        num_classes=12,
        image_mean=(0.5, 0.5, 0.5), image_std=(0.5, 0.5, 0.5),
    )
    key = jax.random.PRNGKey(0)
    pkey, xkey = jax.random.split(key)
    params = init_params(pkey, cfg)
    x = jax.random.uniform(xkey, (4, cfg["channels"], cfg["image"], cfg["image"]),
                           jnp.float32)

    # tb=2 / mlp_tile=128 exercise both the batched-step and MLP-streaming paths
    logits = custom_vit_forward(x, params, cfg, tb=2, mlp_tile=128)
    jax.block_until_ready(logits)

    ref = reference_forward(x, params, cfg)
    assert logits.shape == (4, cfg["num_classes"])
    max_diff = float(jnp.max(jnp.abs(logits - ref)))
    # bf16 MXU inputs dominate the residual tolerance (softmax divide is now exact)
    assert jnp.allclose(logits, ref, atol=2e-2, rtol=2e-2), (
        f"mismatch vs reference (max abs diff {max_diff})")
    print("KERNEL_OK")
</pallas_src>

<mosaic_0001>
module attributes {stable_mosaic.version = 11 : i64} {
  func.func @_patch_embed_kernel(%arg0: i32, %arg1: memref<16x768xbf16, #tpu.memory_space<vmem>>, %arg2: memref<768x128xbf16, #tpu.memory_space<vmem>>, %arg3: memref<1x128xf32, #tpu.memory_space<vmem>>, %arg4: memref<16x128xf32, #tpu.memory_space<vmem>>) attributes {dimension_semantics = [#tpu.dimension_semantics<parallel>], iteration_bounds = array<i64: 1>, scalar_prefetch = 0 : i64, scratch_operands = 0 : i64, tpu.core_type = #tpu.core_type<tc>, window_params = [{transform_indices = @transform_0, window_bounds = array<i64: 16, 768>}, {pipeline_mode = #tpu.pipeline_mode<synchronous>, transform_indices = @transform_1, window_bounds = array<i64: 768, 128>}, {pipeline_mode = #tpu.pipeline_mode<synchronous>, transform_indices = @transform_2, window_bounds = array<i64: 1, 128>}, {transform_indices = @transform_3, window_bounds = array<i64: 16, 128>}]} {
    %c0 = arith.constant 0 : index
    %c0_0 = arith.constant 0 : index
    %0 = vector.load %arg1[%c0, %c0_0] : memref<16x768xbf16, #tpu.memory_space<vmem>>, vector<16x768xbf16>
    %c0_1 = arith.constant 0 : index
    %c0_2 = arith.constant 0 : index
    %1 = vector.load %arg2[%c0_1, %c0_2] : memref<768x128xbf16, #tpu.memory_space<vmem>>, vector<768x128xbf16>
    %cst = arith.constant dense<0.000000e+00> : vector<16x128xf32>
    %2 = tpu.matmul %0, %1, %cst {dimension_numbers = #tpu.dot_dimension_numbers<[1], [0], [0], [1], [0, 0, 1, 1], [], []>} : vector<16x768xbf16>, vector<768x128xbf16>, vector<16x128xf32> -> vector<16x128xf32>
    %c0_3 = arith.constant 0 : index
    %c0_4 = arith.constant 0 : index
    %3 = vector.load %arg3[%c0_3, %c0_4] : memref<1x128xf32, #tpu.memory_space<vmem>>, vector<1x128xf32>
    %4 = vector.broadcast %3 : vector<1x128xf32> to vector<16x128xf32>
    %5 = arith.addf %2, %4 : vector<16x128xf32>
    %c0_5 = arith.constant 0 : index
    %c0_6 = arith.constant 0 : index
    %6 = vector.load %arg4[%c0_5, %c0_6] : memref<16x128xf32, #tpu.memory_space<vmem>>, vector<16x128xf32>
    tpu.vector_store %arg4[%c0_5, %c0_6], %5 {strides = array<i32>} : memref<16x128xf32, #tpu.memory_space<vmem>>, vector<16x128xf32>,
    return
  }
  func.func @transform_0(%arg0: i32) -> (i32, i32) {
    %c0_i32 = arith.constant 0 : i32
    %c0_i32_0 = arith.constant 0 : i32
    return %arg0, %c0_i32 : i32, i32
  }
  func.func @transform_1(%arg0: i32) -> (i32, i32) {
    %c0_i32 = arith.constant 0 : i32
    %c0_i32_0 = arith.constant 0 : i32
    %c0_i32_1 = arith.constant 0 : i32
    return %c0_i32, %c0_i32_0 : i32, i32
  }
  func.func @transform_2(%arg0: i32) -> (i32, i32) {
    %c0_i32 = arith.constant 0 : i32
    %c0_i32_0 = arith.constant 0 : i32
    %c0_i32_1 = arith.constant 0 : i32
    return %c0_i32, %c0_i32_0 : i32, i32
  }
  func.func @transform_3(%arg0: i32) -> (i32, i32) {
    %c0_i32 = arith.constant 0 : i32
    %c0_i32_0 = arith.constant 0 : i32
    return %arg0, %c0_i32 : i32, i32
  }
}

</mosaic_0001>

<llo_original>
// kernel: tpu_custom_call.1
$region0: #{tpu_custom_call.1}
  #allocation0 [shape = 'u32[]', space=smem, size = 0x4, offset = 0x4, fixed_abs, tag = 'smem constant byte address 0x4 - core index']
  #allocation1 [shape = 'u32[72,128]{1,0:T(1,128)}', space=vmem, size = 0x9000, scoped, tag = 'internal scratch']
  %s0 = inlined_call_operand.hbm [shape: bf16[16,768], index: 0, kind: input, shape index: {}]
  %s1 = inlined_call_operand.hbm [shape: bf16[768,128], index: 1, kind: input, shape index: {}]
  %s2 = inlined_call_operand.vmem [shape: f32[1,128], index: 2, kind: input, shape index: {}]
  %s3 = inlined_call_operand.hbm [shape: f32[16,128], index: 3, kind: output, shape index: {}]
  %s4 = sld [smem:[#allocation0]]
  $region30: #{tpu_custom_call.1} parent=0
    _
  %s6 = ssub.s32 1, %s4
  %s7 = scalar_select 0, %s6, %s4
  $region1: #{tpu_custom_call.1} parent=0
    #allocation2 [shape = 'u8[24576]{0}', space=vmem, size = 0x6000, scoped, tag = 'input window, operand 0, single buffered']
    #allocation3 [shape = 's32[1]{0}', space=sflag, size = 0x4, scoped, tag = 'scoped memory for tpu_custom_call.1']
    #allocation4 [shape = 's32[1]{0}', space=sflag, size = 0x4, scoped, tag = 'scoped memory for tpu_custom_call.1']
    #allocation5 [shape = 'u8[196608]{0}', space=vmem, size = 0x30000, scoped, tag = 'input window, operand 1, single buffered']
    #allocation6 [shape = 's32[1]{0}', space=sflag, size = 0x4, scoped, tag = 'scoped memory for tpu_custom_call.1']
    #allocation7 [shape = 'u8[8192]{0}', space=vmem, size = 0x2000, scoped, tag = 'output window, operand 0, single buffered']
    %8 = vsyncpa [#allocation3], 0
    %9 = vsyncpa [#allocation6], 0
    %10 = vsyncpa [#allocation4], 0
    // Predicated region
    $region2: #{tpu_custom_call.1} parent=1 // pred_check
      _
    $region3: #{tpu_custom_call.1} parent=1 // pred_check_branch
      %12 = sbr.rel (0) target = $region5
    $region4: #{tpu_custom_call.1} parent=1 // pred_region
      %14 = vsyncadd [#allocation3], 0
      %s15 = sshll.u32 %s0, 4
      %s16 = int_to_ptr.hbm [resolvable:$true] %s15
      %s17 = sshll.u32 [#allocation2], 4
      %s18 = int_to_ptr.vmem [resolvable:$true] %s17
      %23 = dma.hbm_to_vmem [thread:$0]  %s16, 768, %s18, [#allocation3], 384, 384, 24
    $region5: #{tpu_custom_call.1} parent=1 // pred_fallthru
      _
    // Predicated region
    $region6: #{tpu_custom_call.1} parent=1 // pred_check
      _
    $region7: #{tpu_custom_call.1} parent=1 // pred_check_branch
      %25 = sbr.rel (0) target = $region9
    $region8: #{tpu_custom_call.1} parent=1 // pred_region
      %27 = vsyncadd [#allocation6], 0
      %s28 = sshll.u32 %s1, 4
      %s29 = int_to_ptr.hbm [resolvable:$true] %s28
      %s30 = sshll.u32 [#allocation5], 4
      %s31 = int_to_ptr.vmem [resolvable:$true] %s30
      %36 = dma.hbm_to_vmem [thread:$0]  %s29, 6144, %s31, [#allocation6], 64, 64, 4
    $region9: #{tpu_custom_call.1} parent=1 // pred_fallthru
      _
    // Predicated region
    $region10: #{tpu_custom_call.1} parent=1 // pred_check
      _
    $region11: #{tpu_custom_call.1} parent=1 // pred_check_branch
      %38 = sbr.rel (0) target = $region13
    $region12: #{tpu_custom_call.1} parent=1 // pred_region
      _
    $region13: #{tpu_custom_call.1} parent=1 // pred_fallthru
      _
    // Predicated region
    $region14: #{tpu_custom_call.1} parent=1 // pred_check
      _
    $region15: #{tpu_custom_call.1} parent=1 // pred_check_branch
      %40 = sbr.rel (0) target = $region17
    $region16: #{tpu_custom_call.1} parent=1 // pred_region
      %42 = dma.done [#allocation3], 768
    $region17: #{tpu_custom_call.1} parent=1 // pred_fallthru
      _
    // Predicated region
    $region18: #{tpu_custom_call.1} parent=1 // pred_check
      _
    $region19: #{tpu_custom_call.1} parent=1 // pred_check_branch
      %44 = sbr.rel (0) target = $region21
    $region20: #{tpu_custom_call.1} parent=1 // pred_region
      %46 = dma.done [#allocation6], 6144
    $region21: #{tpu_custom_call.1} parent=1 // pred_fallthru
      _
    %v47 = vld [vmem:[#allocation2] sm:$0xff]
    %v48 = vld [vmem:[#allocation2 + $0x8] sm:$0xff]
    %v49 = vld [vmem:[#allocation2 + $0x10] sm:$0xff]
    %v50 = vld [vmem:[#allocation2 + $0x18] sm:$0xff]
    %v51 = vld [vmem:[#allocation2 + $0x20] sm:$0xff]
    %v52 = vld [vmem:[#allocation2 + $0x28] sm:$0xff]
    %v53 = vld [vmem:[#allocation5] sm:$0xf]
    %v54 = vld [vmem:[#allocation5 + $0x4] sm:$0xf]
    %v55 = vld [vmem:[#allocation5 + $0x8] sm:$0xf]
    %v56 = vld [vmem:[#allocation5 + $0xc] sm:$0xf]
    %v57 = vld [vmem:[#allocation5 + $0x10] sm:$0xf]
    %v58 = vld [vmem:[#allocation5 + $0x14] sm:$0xf]
    %v59 = vld [vmem:[#allocation5 + $0x18] sm:$0xf]
    %v60 = vld [vmem:[#allocation5 + $0x1c] sm:$0xf]
    %v61 = vld [vmem:[#allocation5 + $0x20] sm:$0xf]
    %v62 = vld [vmem:[#allocation5 + $0x24] sm:$0xf]
    %v63 = vld [vmem:[#allocation5 + $0x28] sm:$0xf]
    %v64 = vld [vmem:[#allocation5 + $0x2c] sm:$0xf]
    %v65 = vld [vmem:[#allocation5 + $0x30] sm:$0xf]
    %v66 = vld [vmem:[#allocation5 + $0x34] sm:$0xf]
    %v67 = vld [vmem:[#allocation5 + $0x38] sm:$0xf]
    %v68 = vld [vmem:[#allocation5 + $0x3c] sm:$0xf]
    %v69 = vld [vmem:[#allocation5 + $0x40] sm:$0xf]
    %v70 = vld [vmem:[#allocation5 + $0x44] sm:$0xf]
    %v71 = vld [vmem:[#allocation5 + $0x48] sm:$0xf]
    %v72 = vld [vmem:[#allocation5 + $0x4c] sm:$0xf]
    %v73 = vld [vmem:[#allocation5 + $0x50] sm:$0xf]
    %v74 = vld [vmem:[#allocation5 + $0x54] sm:$0xf]
    %v75 = vld [vmem:[#allocation5 + $0x58] sm:$0xf]
    %v76 = vld [vmem:[#allocation5 + $0x5c] sm:$0xf]
    %v77 = vld [vmem:[#allocation5 + $0x60] sm:$0xf]
    %v78 = vld [vmem:[#allocation5 + $0x64] sm:$0xf]
    %v79 = vld [vmem:[#allocation5 + $0x68] sm:$0xf]
    %v80 = vld [vmem:[#allocation5 + $0x6c] sm:$0xf]
    %v81 = vld [vmem:[#allocation5 + $0x70] sm:$0xf]
    %v82 = vld [vmem:[#allocation5 + $0x74] sm:$0xf]
    %v83 = vld [vmem:[#allocation5 + $0x78] sm:$0xf]
    %v84 = vld [vmem:[#allocation5 + $0x7c] sm:$0xf]
    %v85 = vld [vmem:[#allocation5 + $0x80] sm:$0xf]
    %v86 = vld [vmem:[#allocation5 + $0x84] sm:$0xf]
    %v87 = vld [vmem:[#allocation5 + $0x88] sm:$0xf]
    %v88 = vld [vmem:[#allocation5 + $0x8c] sm:$0xf]
    %v89 = vld [vmem:[#allocation5 + $0x90] sm:$0xf]
    %v90 = vld [vmem:[#allocation5 + $0x94] sm:$0xf]
    %v91 = vld [vmem:[#allocation5 + $0x98] sm:$0xf]
    %v92 = vld [vmem:[#allocation5 + $0x9c] sm:$0xf]
    %v93 = vld [vmem:[#allocation5 + $0xa0] sm:$0xf]
    %v94 = vld [vmem:[#allocation5 + $0xa4] sm:$0xf]
    %v95 = vld [vmem:[#allocation5 + $0xa8] sm:$0xf]
    %v96 = vld [vmem:[#allocation5 + $0xac] sm:$0xf]
    %v97 = vld [vmem:[#allocation5 + $0xb0] sm:$0xf]
    %v98 = vld [vmem:[#allocation5 + $0xb4] sm:$0xf]
    %v99 = vld [vmem:[#allocation5 + $0xb8] sm:$0xf]
    %v100 = vld [vmem:[#allocation5 + $0xbc] sm:$0xf]
    %v101 = vld [vmem:[#allocation5 + $0xc0] sm:$0xf]
    %v102 = vld [vmem:[#allocation5 + $0xc4] sm:$0xf]
    %v103 = vld [vmem:[#allocation5 + $0xc8] sm:$0xf]
    %v104 = vld [vmem:[#allocation5 + $0xcc] sm:$0xf]
    %v105 = vld [vmem:[#allocation5 + $0xd0] sm:$0xf]
    %v106 = vld [vmem:[#allocation5 + $0xd4] sm:$0xf]
    %v107 = vld [vmem:[#allocation5 + $0xd8] sm:$0xf]
    %v108 = vld [vmem:[#allocation5 + $0xdc] sm:$0xf]
    %v109 = vld [vmem:[#allocation5 + $0xe0] sm:$0xf]
    %v110 = vld [vmem:[#allocation5 + $0xe4] sm:$0xf]
    %v111 = vld [vmem:[#allocation5 + $0xe8] sm:$0xf]
    %v112 = vld [vmem:[#allocation5 + $0xec] sm:$0xf]
    %v113 = vld [vmem:[#allocation5 + $0xf0] sm:$0xf]
    %v114 = vld [vmem:[#allocation5 + $0xf4] sm:$0xf]
    %v115 = vld [vmem:[#allocation5 + $0xf8] sm:$0xf]
    %v116 = vld [vmem:[#allocation5 + $0xfc] sm:$0xf]
    %v117 = vld [vmem:[#allocation5 + $0x100] sm:$0xf]
    %v118 = vld [vmem:[#allocation5 + $0x104] sm:$0xf]
    %v119 = vld [vmem:[#allocation5 + $0x108] sm:$0xf]
    %v120 = vld [vmem:[#allocation5 + $0x10c] sm:$0xf]
    %v121 = vld [vmem:[#allocation5 + $0x110] sm:$0xf]
    %v122 = vld [vmem:[#allocation5 + $0x114] sm:$0xf]
    %v123 = vld [vmem:[#allocation5 + $0x118] sm:$0xf]
    %v124 = vld [vmem:[#allocation5 + $0x11c] sm:$0xf]
    %v125 = vld [vmem:[#allocation5 + $0x120] sm:$0xf]
    %v126 = vld [vmem:[#allocation5 + $0x124] sm:$0xf]
    %v127 = vld [vmem:[#allocation5 + $0x128] sm:$0xf]
    %v128 = vld [vmem:[#allocation5 + $0x12c] sm:$0xf]
    %v129 = vld [vmem:[#allocation5 + $0x130] sm:$0xf]
    %v130 = vld [vmem:[#allocation5 + $0x134] sm:$0xf]
    %v131 = vld [vmem:[#allocation5 + $0x138] sm:$0xf]
    %v132 = vld [vmem:[#allocation5 + $0x13c] sm:$0xf]
    %v133 = vld [vmem:[#allocation5 + $0x140] sm:$0xf]
    %v134 = vld [vmem:[#allocation5 + $0x144] sm:$0xf]
    %v135 = vld [vmem:[#allocation5 + $0x148] sm:$0xf]
    %v136 = vld [vmem:[#allocation5 + $0x14c] sm:$0xf]
    %v137 = vld [vmem:[#allocation5 + $0x150] sm:$0xf]
    %v138 = vld [vmem:[#allocation5 + $0x154] sm:$0xf]
    %v139 = vld [vmem:[#allocation5 + $0x158] sm:$0xf]
    %v140 = vld [vmem:[#allocation5 + $0x15c] sm:$0xf]
    %v141 = vld [vmem:[#allocation5 + $0x160] sm:$0xf]
    %v142 = vld [vmem:[#allocation5 + $0x164] sm:$0xf]
    %v143 = vld [vmem:[#allocation5 + $0x168] sm:$0xf]
    %v144 = vld [vmem:[#allocation5 + $0x16c] sm:$0xf]
    %v145 = vld [vmem:[#allocation5 + $0x170] sm:$0xf]
    %v146 = vld [vmem:[#allocation5 + $0x174] sm:$0xf]
    %v147 = vld [vmem:[#allocation5 + $0x178] sm:$0xf]
    %v148 = vld [vmem:[#allocation5 + $0x17c] sm:$0xf]
    %v149 = vld [vmem:[%s2] sm:$0x1]
    %v151 = vperm.slane %v149, 0
    %v159 = vunpack.c.l.b16 %v47
    %v160 = vunpack.c.h.b16 %v47
    %v161 = vunpack.c.l.b16 %v48
    %v162 = vunpack.c.h.b16 %v48
    %v163 = vunpack.c.l.b16 %v49
    %v164 = vunpack.c.h.b16 %v49
    %v165 = vunpack.c.l.b16 %v50
    %v166 = vunpack.c.h.b16 %v50
    %v167 = vunpack.c.l.b16 %v51
    %v168 = vunpack.c.h.b16 %v51
    %v169 = vunpack.c.l.b16 %v52
    %v170 = vunpack.c.h.b16 %v52
    %v171 = vpack.c.b16 %v165, %v159
    %v172 = vpack.c.b16 %v166, %v160
    %v173 = vpack.c.b16 %v167, %v161
    %v174 = vpack.c.b16 %v168, %v162
    %v175 = vpack.c.b16 %v169, %v163
    %v176 = vpack.c.b16 %v170, %v164
    %v279 = vunpack.c.l.b16 %v53
    %v280 = vunpack.c.l.b16 %v54
    %v281 = vunpack.c.l.b16 %v55
    %v282 = vunpack.c.l.b16 %v56
    %v283 = vunpack.c.l.b16 %v57
    %v284 = vunpack.c.l.b16 %v58
    %v285 = vunpack.c.l.b16 %v59
    %v286 = vunpack.c.l.b16 %v60
    %v287 = vunpack.c.l.b16 %v61
    %v288 = vunpack.c.l.b16 %v62
    %v289 = vunpack.c.l.b16 %v63
    %v290 = vunpack.c.l.b16 %v64
    %v291 = vunpack.c.l.b16 %v65
    %v292 = vunpack.c.l.b16 %v66
    %v293 = vunpack.c.l.b16 %v67
    %v294 = vunpack.c.l.b16 %v68
    %v295 = vunpack.c.l.b16 %v69
    %v296 = vunpack.c.l.b16 %v70
    %v297 = vunpack.c.l.b16 %v71
    %v298 = vunpack.c.l.b16 %v72
    %v299 = vunpack.c.l.b16 %v73
    %v300 = vunpack.c.l.b16 %v74
    %v301 = vunpack.c.l.b16 %v75
    %v302 = vunpack.c.l.b16 %v76
    %v303 = vunpack.c.l.b16 %v77
    %v304 = vunpack.c.l.b16 %v78
    %v305 = vunpack.c.l.b16 %v79
    %v306 = vunpack.c.l.b16 %v80
    %v307 = vunpack.c.l.b16 %v81
    %v308 = vunpack.c.l.b16 %v82
    %v309 = vunpack.c.l.b16 %v83
    %v310 = vunpack.c.l.b16 %v84
    %v311 = vunpack.c.l.b16 %v85
    %v312 = vunpack.c.l.b16 %v86
    %v313 = vunpack.c.l.b16 %v87
    %v314 = vunpack.c.l.b16 %v88
    %v315 = vunpack.c.l.b16 %v89
    %v316 = vunpack.c.l.b16 %v90
    %v317 = vunpack.c.l.b16 %v91
    %v318 = vunpack.c.l.b16 %v92
    %v319 = vunpack.c.l.b16 %v93
    %v320 = vunpack.c.l.b16 %v94
    %v321 = vunpack.c.l.b16 %v95
    %v322 = vunpack.c.l.b16 %v96
    %v323 = vunpack.c.l.b16 %v97
    %v324 = vunpack.c.l.b16 %v98
    %v325 = vunpack.c.l.b16 %v99
    %v326 = vunpack.c.l.b16 %v100
    %v327 = vunpack.c.l.b16 %v101
    %v328 = vunpack.c.l.b16 %v102
    %v329 = vunpack.c.l.b16 %v103
    %v330 = vunpack.c.l.b16 %v104
    %v331 = vunpack.c.l.b16 %v105
    %v332 = vunpack.c.l.b16 %v106
    %v333 = vunpack.c.l.b16 %v107
    %v334 = vunpack.c.l.b16 %v108
    %v335 = vunpack.c.l.b16 %v109
    %v336 = vunpack.c.l.b16 %v110
    %v337 = vunpack.c.l.b16 %v111
    %v338 = vunpack.c.l.b16 %v112
    %v339 = vunpack.c.l.b16 %v113
    %v340 = vunpack.c.l.b16 %v114
    %v341 = vunpack.c.l.b16 %v115
    %v342 = vunpack.c.l.b16 %v116
    %v343 = vunpack.c.l.b16 %v117
    %v344 = vunpack.c.l.b16 %v118
    %v345 = vunpack.c.l.b16 %v119
    %v346 = vunpack.c.l.b16 %v120
    %v347 = vunpack.c.l.b16 %v121
    %v348 = vunpack.c.l.b16 %v122
    %v349 = vunpack.c.l.b16 %v123
    %v350 = vunpack.c.l.b16 %v124
    %v351 = vunpack.c.l.b16 %v125
    %v352 = vunpack.c.l.b16 %v126
    %v353 = vunpack.c.l.b16 %v127
    %v354 = vunpack.c.l.b16 %v128
    %v355 = vunpack.c.l.b16 %v129
    %v356 = vunpack.c.l.b16 %v130
    %v357 = vunpack.c.l.b16 %v131
    %v358 = vunpack.c.l.b16 %v132
    %v359 = vunpack.c.l.b16 %v133
    %v360 = vunpack.c.l.b16 %v134
    %v361 = vunpack.c.l.b16 %v135
    %v362 = vunpack.c.l.b16 %v136
    %v363 = vunpack.c.l.b16 %v137
    %v364 = vunpack.c.l.b16 %v138
    %v365 = vunpack.c.l.b16 %v139
    %v366 = vunpack.c.l.b16 %v140
    %v367 = vunpack.c.l.b16 %v141
    %v368 = vunpack.c.l.b16 %v142
    %v369 = vunpack.c.l.b16 %v143
    %v370 = vunpack.c.l.b16 %v144
    %v371 = vunpack.c.l.b16 %v145
    %v372 = vunpack.c.l.b16 %v146
    %v373 = vunpack.c.l.b16 %v147
    %v374 = vunpack.c.l.b16 %v148
    %v375 = vpack.c.b16 %v280, %v279
    %v376 = vpack.c.b16 %v282, %v281
    %v377 = vpack.c.b16 %v284, %v283
    %v378 = vpack.c.b16 %v286, %v285
    %v379 = vpack.c.b16 %v288, %v287
    %v380 = vpack.c.b16 %v290, %v289
    %v381 = vpack.c.b16 %v292, %v291
    %v382 = vpack.c.b16 %v294, %v293
    %v383 = vpack.c.b16 %v296, %v295
    %v384 = vpack.c.b16 %v298, %v297
    %v385 = vpack.c.b16 %v300, %v299
    %v386 = vpack.c.b16 %v302, %v301
    %v387 = vpack.c.b16 %v304, %v303
    %v388 = vpack.c.b16 %v306, %v305
    %v389 = vpack.c.b16 %v308, %v307
    %v390 = vpack.c.b16 %v310, %v309
    %v391 = vpack.c.b16 %v312, %v311
    %v392 = vpack.c.b16 %v314, %v313
    %v393 = vpack.c.b16 %v316, %v315
    %v394 = vpack.c.b16 %v318, %v317
    %v395 = vpack.c.b16 %v320, %v319
    %v396 = vpack.c.b16 %v322, %v321
    %v397 = vpack.c.b16 %v324, %v323
    %v398 = vpack.c.b16 %v326, %v325
    %v399 = vpack.c.b16 %v328, %v327
    %v400 = vpack.c.b16 %v330, %v329
    %v401 = vpack.c.b16 %v332, %v331
    %v402 = vpack.c.b16 %v334, %v333
    %v403 = vpack.c.b16 %v336, %v335
    %v404 = vpack.c.b16 %v338, %v337
    %v405 = vpack.c.b16 %v340, %v339
    %v406 = vpack.c.b16 %v342, %v341
    %v407 = vpack.c.b16 %v344, %v343
    %v408 = vpack.c.b16 %v346, %v345
    %v409 = vpack.c.b16 %v348, %v347
    %v410 = vpack.c.b16 %v350, %v349
    %v411 = vpack.c.b16 %v352, %v351
    %v412 = vpack.c.b16 %v354, %v353
    %v413 = vpack.c.b16 %v356, %v355
    %v414 = vpack.c.b16 %v358, %v357
    %v415 = vpack.c.b16 %v360, %v359
    %v416 = vpack.c.b16 %v362, %v361
    %v417 = vpack.c.b16 %v364, %v363
    %v418 = vpack.c.b16 %v366, %v365
    %v419 = vpack.c.b16 %v368, %v367
    %v420 = vpack.c.b16 %v370, %v369
    %v421 = vpack.c.b16 %v372, %v371
    %v422 = vpack.c.b16 %v374, %v373
    %471 = vmatpush.bf16.msra.mxu0 %v382
    %472 = vmatpush.bf16.msra.mxu0 %v381
    %473 = vmatpush.bf16.msra.mxu0 %v380
    %474 = vmatpush.bf16.msra.mxu0 %v379
    %475 = vmatpush.bf16.msra.mxu0 %v378
    %476 = vmatpush.bf16.msra.mxu0 %v377
    %477 = vmatpush.bf16.msra.mxu0 %v376
    %478 = vmatpush.bf16.msra.mxu0 %v375
    %479 = vmatmul.bf16.gmra.mxu0 %v171
    %v480 = vpop.f32.mrf.mxu0
    %v481 = vadd.f32 %v151, %v480
    %v482 = vpop.f32.mrf.mxu0
    %v483 = vadd.f32 %v151, %v482
    %484 = vdwg.mxu0
    %485 = vmatpush.bf16.msra.mxu0 %v390
    %486 = vmatpush.bf16.msra.mxu0 %v389
    %487 = vmatpush.bf16.msra.mxu0 %v388
    %488 = vmatpush.bf16.msra.mxu0 %v387
    %489 = vmatpush.bf16.msra.mxu0 %v386
    %490 = vmatpush.bf16.msra.mxu0 %v385
    %491 = vmatpush.bf16.msra.mxu0 %v384
    %492 = vmatpush.bf16.msra.mxu0 %v383
    %493 = vmatmul.bf16.gmra.mxu0 %v172
    %v494 = vpop.f32.mrf.mxu0
    %v495 = vadd.f32 %v481, %v494
    %v496 = vpop.f32.mrf.mxu0
    %v497 = vadd.f32 %v483, %v496
    %498 = vdwg.mxu0
    %499 = vmatpush.bf16.msra.mxu0 %v398
    %500 = vmatpush.bf16.msra.mxu0 %v397
    %501 = vmatpush.bf16.msra.mxu0 %v396
    %502 = vmatpush.bf16.msra.mxu0 %v395
    %503 = vmatpush.bf16.msra.mxu0 %v394
    %504 = vmatpush.bf16.msra.mxu0 %v393
    %505 = vmatpush.bf16.msra.mxu0 %v392
    %506 = vmatpush.bf16.msra.mxu0 %v391
    %507 = vmatmul.bf16.gmra.mxu0 %v173
    %v508 = vpop.f32.mrf.mxu0
    %v509 = vadd.f32 %v495, %v508
    %v510 = vpop.f32.mrf.mxu0
    %v511 = vadd.f32 %v497, %v510
    %512 = vdwg.mxu0
    %513 = vmatpush.bf16.msra.mxu0 %v406
    %514 = vmatpush.bf16.msra.mxu0 %v405
    %515 = vmatpush.bf16.msra.mxu0 %v404
    %516 = vmatpush.bf16.msra.mxu0 %v403
    %517 = vmatpush.bf16.msra.mxu0 %v402
    %518 = vmatpush.bf16.msra.mxu0 %v401
    %519 = vmatpush.bf16.msra.mxu0 %v400
    %520 = vmatpush.bf16.msra.mxu0 %v399
    %521 = vmatmul.bf16.gmra.mxu0 %v174
    %v522 = vpop.f32.mrf.mxu0
    %v523 = vadd.f32 %v509, %v522
    %v524 = vpop.f32.mrf.mxu0
    %v525 = vadd.f32 %v511, %v524
    %526 = vdwg.mxu0
    %527 = vmatpush.bf16.msra.mxu0 %v414
    %528 = vmatpush.bf16.msra.mxu0 %v413
    %529 = vmatpush.bf16.msra.mxu0 %v412
    %530 = vmatpush.bf16.msra.mxu0 %v411
    %531 = vmatpush.bf16.msra.mxu0 %v410
    %532 = vmatpush.bf16.msra.mxu0 %v409
    %533 = vmatpush.bf16.msra.mxu0 %v408
    %534 = vmatpush.bf16.msra.mxu0 %v407
    %535 = vmatmul.bf16.gmra.mxu0 %v175
    %v536 = vpop.f32.mrf.mxu0
    %v537 = vadd.f32 %v523, %v536
    %v538 = vpop.f32.mrf.mxu0
    %v539 = vadd.f32 %v525, %v538
    %540 = vdwg.mxu0
    %541 = vmatpush.bf16.msra.mxu0 %v422
    %542 = vmatpush.bf16.msra.mxu0 %v421
    %543 = vmatpush.bf16.msra.mxu0 %v420
    %544 = vmatpush.bf16.msra.mxu0 %v419
    %545 = vmatpush.bf16.msra.mxu0 %v418
    %546 = vmatpush.bf16.msra.mxu0 %v417
    %547 = vmatpush.bf16.msra.mxu0 %v416
    %548 = vmatpush.bf16.msra.mxu0 %v415
    %549 = vmatmul.bf16.gmra.mxu0 %v176
    %v550 = vpop.f32.mrf.mxu0
    %v551 = vadd.f32 %v537, %v550
    %v552 = vpop.f32.mrf.mxu0
    %v553 = vadd.f32 %v539, %v552
    %554 = vdwg.mxu0
    %555 = vst [vmem:[#allocation7] sm:$0xff] %v551
    %556 = vst [vmem:[#allocation7 + $0x8] sm:$0xff] %v553
    // Predicated region
    $region22: #{tpu_custom_call.1} parent=1 // pred_check
      _
    $region23: #{tpu_custom_call.1} parent=1 // pred_check_branch
      %558 = sbr.rel (0) target = $region25
    $region24: #{tpu_custom_call.1} parent=1 // pred_region
      %560 = vsyncadd [#allocation4], 0
      %s561 = sshll.u32 [#allocation7], 4
      %s562 = int_to_ptr.vmem [resolvable:$true] %s561
      %s563 = sshll.u32 %s3, 4
      %s564 = int_to_ptr.hbm [resolvable:$true] %s563
      %569 = dma.vmem_to_hbm [thread:$0]  %s562, 256, %s564, [#allocation4], 128, 128, 8
    $region25: #{tpu_custom_call.1} parent=1 // pred_fallthru
      _
    // Predicated region
    $region26: #{tpu_custom_call.1} parent=1 // pred_check
      _
    $region27: #{tpu_custom_call.1} parent=1 // pred_check_branch
      %571 = sbr.rel (0) target = $region29
    $region28: #{tpu_custom_call.1} parent=1 // pred_region
      %573 = dma.done [#allocation4], 256
    $region29: #{tpu_custom_call.1} parent=1 // pred_fallthru
      _
    %574 = vsyncpa [#allocation3], 1
    %575 = vsyncpa [#allocation6], 1
    %576 = vsyncpa [#allocation4], 1

</llo_original>
